<compile_context>
chip_gen: v6e
topology: v6e:2x2x1
jax: 0.10.0
libtpu: 0.0.40
codegen_flags: <defaults>
</compile_context>

<pallas_src>
import jax
import jax.numpy as jnp
from jax import lax
from jax.experimental import pallas as pl
from jax.experimental.pallas import tpu as pltpu

LEAK = 0.2
BN_EPS = 1e-5


def _leaky(x):
    return jnp.where(x >= 0, x, LEAK * x)


def _features(x_ref, w1_ref, b1_ref, w2_ref):
    """conv1 (VPU FMAs) + LeakyReLU + conv2 (MXU, bf16). Returns h2: (C2, T) f32."""
    x = x_ref[...]            # (Cin, T) f32
    w1 = w1_ref[...]          # (C1, Cin) f32
    cin = x.shape[0]
    # conv1 as Cin broadcast-FMAs: (C1,1) x (1,T) outer-product accumulation (VPU).
    acc = x[0:1, :] * w1[:, 0:1]
    for c in range(1, cin):
        acc = acc + x[c:c + 1, :] * w1[:, c:c + 1]
    h1 = _leaky(acc + b1_ref[...])                      # (C1, T) f32
    # conv2 on the MXU: bf16 operands, f32 accumulation.
    h2 = jnp.dot(w2_ref[...], h1.astype(jnp.bfloat16),
                 preferred_element_type=jnp.float32)    # (C2, T) f32
    return h2


def _stats_kernel(x_ref, w1_ref, b1_ref, w2_ref, sum_ref, sq_ref):
    """Phase 1: per-tile partial BN statistics of h2 (one-pass sum / sum of squares)."""
    h2 = _features(x_ref, w1_ref, b1_ref, w2_ref)
    sum_ref[0] = jnp.sum(h2, axis=-1, keepdims=True)          # (C2, 1)
    sq_ref[0] = jnp.sum(h2 * h2, axis=-1, keepdims=True)      # (C2, 1)


def _apply_kernel(x_ref, w1_ref, b1_ref, w2_ref, scale_ref, shift_ref, w3_ref, o_ref):
    """Phase 2: recompute h2, apply folded BN (scale/shift) + LeakyReLU + conv3."""
    h2 = _features(x_ref, w1_ref, b1_ref, w2_ref)
    h3 = _leaky(h2 * scale_ref[...] + shift_ref[...])          # (C2, T) f32
    # conv3 (1 output channel): VPU multiply + sublane reduce -> lane-dense (1, T).
    o_ref[...] = jnp.sum(h3 * w3_ref[...], axis=0, keepdims=True)


def vgg_discriminator_forward(x_nchw, params, *, max_tile=4096):
    """x_nchw: (N, C, H, W) float32. Returns (N, 1, H, W) float32.

    max_tile: pixels per grid step (multiple of 128). 4096 keeps the per-step footprint
    well under v7x's scoped VMEM; v5e/v6e can use 8192.
    """
    w1, b1, w2, gamma, beta, w3 = params
    N, C, H, W = x_nchw.shape
    P = N * H * W
    c2 = w2.shape[0]

    # NCHW -> channel-major (C, N*H*W): moves contiguous H*W planes (no per-pixel gather).
    x_cm = jnp.transpose(x_nchw, (1, 0, 2, 3)).reshape(C, P).astype(jnp.float32)

    tile_p = min(max_tile, ((P + 127) // 128) * 128)
    pad = (-P) % tile_p
    if pad:
        x_cm = jnp.pad(x_cm, ((0, 0), (0, pad)))
    Pp = P + pad
    n_tiles = Pp // tile_p

    w2_bf = w2.astype(jnp.bfloat16)

    def rep(a):  # small resident block (weights / BN params), same block every step
        return pl.BlockSpec(a.shape, lambda i, nd=a.ndim: (0,) * nd)

    x_spec = pl.BlockSpec((C, tile_p), lambda i: (0, i))

    cparams = pltpu.CompilerParams(
        dimension_semantics=("parallel",),          # pixel tiles independent -> megacore
        vmem_limit_bytes=32 * 1024 * 1024,          # sized to tile footprint, fits v7x
    )

    # ---- Phase 1: per-tile BN partial statistics -------------------------------------
    sums, sqs = pl.pallas_call(
        _stats_kernel,
        out_shape=(jax.ShapeDtypeStruct((n_tiles, c2, 1), jnp.float32),
                   jax.ShapeDtypeStruct((n_tiles, c2, 1), jnp.float32)),
        grid=(n_tiles,),
        in_specs=[x_spec, rep(w1), rep(b1), rep(w2_bf)],
        out_specs=(pl.BlockSpec((1, c2, 1), lambda i: (i, 0, 0)),
                   pl.BlockSpec((1, c2, 1), lambda i: (i, 0, 0))),
        compiler_params=cparams,
    )(x_cm, w1, b1, w2_bf)

    s = jnp.sum(sums[:, :, 0], axis=0)        # (C2,)
    q = jnp.sum(sqs[:, :, 0], axis=0)         # (C2,)

    if pad:
        # Zero-padded pixels still produce h2_pad = w2 @ leaky(b1); subtract their
        # (identical) contribution so BN stats only see the real P pixels.
        h1p = _leaky(b1[:, 0])
        h2p = jnp.dot(w2_bf, h1p.astype(jnp.bfloat16),
                      preferred_element_type=jnp.float32)
        s = s - pad * h2p
        q = q - pad * (h2p * h2p)

    mean = s / P
    var = q / P - mean * mean                  # biased variance (PyTorch normalization)
    # Fold BN into one per-channel scale/shift (single FMA per element in phase 2).
    scale_v = gamma[:, 0] * lax.rsqrt(var + BN_EPS)
    shift_v = beta[:, 0] - mean * scale_v
    scale = scale_v[:, None].astype(jnp.float32)   # (C2, 1)
    shift = shift_v[:, None].astype(jnp.float32)   # (C2, 1)

    # ---- Phase 2: normalize + LeakyReLU + conv3, lane-dense (1, P) output -------------
    out = pl.pallas_call(
        _apply_kernel,
        out_shape=jax.ShapeDtypeStruct((1, Pp), jnp.float32),
        grid=(n_tiles,),
        in_specs=[x_spec, rep(w1), rep(b1), rep(w2_bf), rep(scale), rep(shift), rep(w3)],
        out_specs=pl.BlockSpec((1, tile_p), lambda i: (0, i)),
        compiler_params=cparams,
    )(x_cm, w1, b1, w2_bf, scale, shift, w3)

    # (1, Pp) -> (N, H, W) -> (N, 1, H, W)
    return out[0, :P].reshape(N, H, W)[:, None, :, :]


def init_params(key, input_nc=3, ndf=64):
    """Synthetic init mirroring the module's __init__: conv ~ N(0,0.02), BN gamma ~ N(1,0.02).

    Channel-major storage: conv weights are (Cout, Cin) (PyTorch layout with the 1x1
    spatial dims squeezed); conv3 is stored transposed as (Cin, 1); BN params are (C, 1).
    """
    k1, k2, k3, k4, k5 = jax.random.split(key, 5)
    w1 = 0.02 * jax.random.normal(k1, (ndf, input_nc), jnp.float32)        # Conv1 weight
    b1 = 0.02 * jax.random.normal(k2, (ndf, 1), jnp.float32)               # Conv1 bias
    w2 = 0.02 * jax.random.normal(k3, (2 * ndf, ndf), jnp.float32)         # Conv2 weight (no bias)
    gamma = 1.0 + 0.02 * jax.random.normal(k4, (2 * ndf, 1), jnp.float32)  # BN weight
    beta = jnp.zeros((2 * ndf, 1), jnp.float32)                            # BN bias
    w3 = 0.02 * jax.random.normal(k5, (2 * ndf, 1), jnp.float32)           # Conv3 weight^T
    return (w1, b1, w2, gamma, beta, w3)


def _reference_forward(x_nchw, params):
    """Pure-JAX reference of the same algorithm (bf16 conv2 operands, f32 accumulate)."""
    w1, b1, w2, gamma, beta, w3 = params
    N, C, H, W = x_nchw.shape
    x = jnp.transpose(x_nchw, (1, 0, 2, 3)).reshape(C, N * H * W)    # (C, P)
    h1 = _leaky(jnp.dot(w1, x) + b1)                                 # (C1, P)
    h2 = jnp.dot(w2.astype(jnp.bfloat16), h1.astype(jnp.bfloat16),
                 preferred_element_type=jnp.float32)                 # (C2, P)
    mean = jnp.mean(h2, axis=1, keepdims=True)
    var = jnp.mean(h2 * h2, axis=1, keepdims=True) - mean * mean
    h3 = _leaky((h2 - mean) * lax.rsqrt(var + BN_EPS) * gamma + beta)
    out = jnp.sum(h3 * w3, axis=0)                                   # (P,)
    return out.reshape(N, H, W)[:, None, :, :]


if __name__ == "__main__":
    key = jax.random.PRNGKey(0)
    kx, kp = jax.random.split(key)

    N, C, H, W = 2, 3, 16, 16  # small NCHW input consistent with input_nc=3
    x = jax.random.normal(kx, (N, C, H, W), jnp.float32)
    params = init_params(kp, input_nc=C, ndf=64)

    y = jax.block_until_ready(vgg_discriminator_forward(x, params))
    y_ref = _reference_forward(x, params)

    assert y.shape == (N, 1, H, W), y.shape
    err = float(jnp.max(jnp.abs(y - y_ref)))
    assert err < 2e-3, err
    print("KERNEL_OK")
</pallas_src>

<mosaic_0001>
module attributes {stable_mosaic.version = 11 : i64} {
  func.func @_stats_kernel(%arg0: i32, %arg1: memref<3x512xf32, #tpu.memory_space<vmem>>, %arg2: memref<64x3xf32, #tpu.memory_space<vmem>>, %arg3: memref<64x1xf32, #tpu.memory_space<vmem>>, %arg4: memref<128x64xbf16, #tpu.memory_space<vmem>>, %arg5: memref<1x128x1xf32, #tpu.memory_space<vmem>>, %arg6: memref<1x128x1xf32, #tpu.memory_space<vmem>>) attributes {dimension_semantics = [#tpu.dimension_semantics<parallel>], iteration_bounds = array<i64: 1>, scalar_prefetch = 0 : i64, scratch_operands = 0 : i64, tpu.core_type = #tpu.core_type<tc>, window_params = [{transform_indices = @transform_0, window_bounds = array<i64: 3, 512>}, {pipeline_mode = #tpu.pipeline_mode<synchronous>, transform_indices = @transform_1, window_bounds = array<i64: 64, 3>}, {pipeline_mode = #tpu.pipeline_mode<synchronous>, transform_indices = @transform_2, window_bounds = array<i64: 64, 1>}, {pipeline_mode = #tpu.pipeline_mode<synchronous>, transform_indices = @transform_3, window_bounds = array<i64: 128, 64>}, {transform_indices = @transform_4, window_bounds = array<i64: 1, 128, 1>}, {transform_indices = @transform_5, window_bounds = array<i64: 1, 128, 1>}]} {
    %c0 = arith.constant 0 : index
    %c0_0 = arith.constant 0 : index
    %0 = vector.load %arg1[%c0, %c0_0] : memref<3x512xf32, #tpu.memory_space<vmem>>, vector<3x512xf32>
    %c0_1 = arith.constant 0 : index
    %c0_2 = arith.constant 0 : index
    %1 = vector.load %arg2[%c0_1, %c0_2] : memref<64x3xf32, #tpu.memory_space<vmem>>, vector<64x3xf32>
    %2 = vector.extract_strided_slice %0 {offsets = [0, 0], sizes = [1, 512], strides = [1, 1]} : vector<3x512xf32> to vector<1x512xf32>
    %3 = vector.extract_strided_slice %1 {offsets = [0, 0], sizes = [64, 1], strides = [1, 1]} : vector<64x3xf32> to vector<64x1xf32>
    %4 = vector.broadcast %2 : vector<1x512xf32> to vector<64x512xf32>
    %5 = vector.broadcast %3 : vector<64x1xf32> to vector<64x512xf32>
    %6 = arith.mulf %4, %5 : vector<64x512xf32>
    %7 = vector.extract_strided_slice %0 {offsets = [1, 0], sizes = [1, 512], strides = [1, 1]} : vector<3x512xf32> to vector<1x512xf32>
    %8 = vector.extract_strided_slice %1 {offsets = [0, 1], sizes = [64, 1], strides = [1, 1]} : vector<64x3xf32> to vector<64x1xf32>
    %9 = vector.broadcast %7 : vector<1x512xf32> to vector<64x512xf32>
    %10 = vector.broadcast %8 : vector<64x1xf32> to vector<64x512xf32>
    %11 = arith.mulf %9, %10 : vector<64x512xf32>
    %12 = arith.addf %6, %11 : vector<64x512xf32>
    %13 = vector.extract_strided_slice %0 {offsets = [2, 0], sizes = [1, 512], strides = [1, 1]} : vector<3x512xf32> to vector<1x512xf32>
    %14 = vector.extract_strided_slice %1 {offsets = [0, 2], sizes = [64, 1], strides = [1, 1]} : vector<64x3xf32> to vector<64x1xf32>
    %15 = vector.broadcast %13 : vector<1x512xf32> to vector<64x512xf32>
    %16 = vector.broadcast %14 : vector<64x1xf32> to vector<64x512xf32>
    %17 = arith.mulf %15, %16 : vector<64x512xf32>
    %18 = arith.addf %12, %17 : vector<64x512xf32>
    %c0_3 = arith.constant 0 : index
    %c0_4 = arith.constant 0 : index
    %19 = vector.load %arg3[%c0_3, %c0_4] : memref<64x1xf32, #tpu.memory_space<vmem>>, vector<64x1xf32>
    %20 = vector.broadcast %19 : vector<64x1xf32> to vector<64x512xf32>
    %21 = arith.addf %18, %20 : vector<64x512xf32>
    %cst = arith.constant 0.000000e+00 : f32
    %22 = vector.broadcast %cst : f32 to vector<64x512xf32>
    %23 = arith.cmpf oge, %21, %22 : vector<64x512xf32>
    %cst_5 = arith.constant 2.000000e-01 : f32
    %24 = vector.broadcast %cst_5 : f32 to vector<64x512xf32>
    %25 = arith.mulf %24, %21 : vector<64x512xf32>
    %26 = arith.select %23, %21, %25 : vector<64x512xi1>, vector<64x512xf32>
    %c0_6 = arith.constant 0 : index
    %c0_7 = arith.constant 0 : index
    %27 = vector.load %arg4[%c0_6, %c0_7] : memref<128x64xbf16, #tpu.memory_space<vmem>>, vector<128x64xbf16>
    %28 = arith.truncf %26 : vector<64x512xf32> to vector<64x512xbf16>
    %cst_8 = arith.constant dense<0.000000e+00> : vector<128x512xf32>
    %29 = tpu.matmul %27, %28, %cst_8 {dimension_numbers = #tpu.dot_dimension_numbers<[1], [0], [0], [1], [0, 0, 1, 1], [], []>} : vector<128x64xbf16>, vector<64x512xbf16>, vector<128x512xf32> -> vector<128x512xf32>
    %cst_9 = arith.constant dense<0.000000e+00> : vector<128xf32>
    %30 = vector.multi_reduction <add>, %29, %cst_9 [1] : vector<128x512xf32> to vector<128xf32>
    %31 = vector.shape_cast %30 : vector<128xf32> to vector<128x1xf32>
    %c0_10 = arith.constant 0 : index
    %c0_11 = arith.constant 0 : index
    %c0_12 = arith.constant 0 : index
    %32 = vector.load %arg5[%c0_10, %c0_11, %c0_12] : memref<1x128x1xf32, #tpu.memory_space<vmem>>, vector<1x128x1xf32>
    %33 = vector.shape_cast %32 : vector<1x128x1xf32> to vector<128x1xf32>
    %34 = vector.shape_cast %31 : vector<128x1xf32> to vector<1x128x1xf32>
    tpu.vector_store %arg5[%c0_10, %c0_11, %c0_12], %34 {strides = array<i32>} : memref<1x128x1xf32, #tpu.memory_space<vmem>>, vector<1x128x1xf32>,
    %35 = arith.mulf %29, %29 : vector<128x512xf32>
    %cst_13 = arith.constant dense<0.000000e+00> : vector<128xf32>
    %36 = vector.multi_reduction <add>, %35, %cst_13 [1] : vector<128x512xf32> to vector<128xf32>
    %37 = vector.shape_cast %36 : vector<128xf32> to vector<128x1xf32>
    %c0_14 = arith.constant 0 : index
    %c0_15 = arith.constant 0 : index
    %c0_16 = arith.constant 0 : index
    %38 = vector.load %arg6[%c0_14, %c0_15, %c0_16] : memref<1x128x1xf32, #tpu.memory_space<vmem>>, vector<1x128x1xf32>
    %39 = vector.shape_cast %38 : vector<1x128x1xf32> to vector<128x1xf32>
    %40 = vector.shape_cast %37 : vector<128x1xf32> to vector<1x128x1xf32>
    tpu.vector_store %arg6[%c0_14, %c0_15, %c0_16], %40 {strides = array<i32>} : memref<1x128x1xf32, #tpu.memory_space<vmem>>, vector<1x128x1xf32>,
    return
  }
  func.func @transform_0(%arg0: i32) -> (i32, i32) {
    %c0_i32 = arith.constant 0 : i32
    %c0_i32_0 = arith.constant 0 : i32
    return %c0_i32, %arg0 : i32, i32
  }
  func.func @transform_1(%arg0: i32) -> (i32, i32) {
    %c0_i32 = arith.constant 0 : i32
    %c0_i32_0 = arith.constant 0 : i32
    %c0_i32_1 = arith.constant 0 : i32
    return %c0_i32, %c0_i32_0 : i32, i32
  }
  func.func @transform_2(%arg0: i32) -> (i32, i32) {
    %c0_i32 = arith.constant 0 : i32
    %c0_i32_0 = arith.constant 0 : i32
    %c0_i32_1 = arith.constant 0 : i32
    return %c0_i32, %c0_i32_0 : i32, i32
  }
  func.func @transform_3(%arg0: i32) -> (i32, i32) {
    %c0_i32 = arith.constant 0 : i32
    %c0_i32_0 = arith.constant 0 : i32
    %c0_i32_1 = arith.constant 0 : i32
    return %c0_i32, %c0_i32_0 : i32, i32
  }
  func.func @transform_4(%arg0: i32) -> (i32, i32, i32) {
    %c0_i32 = arith.constant 0 : i32
    %c0_i32_0 = arith.constant 0 : i32
    %c0_i32_1 = arith.constant 0 : i32
    return %arg0, %c0_i32, %c0_i32_0 : i32, i32, i32
  }
  func.func @transform_5(%arg0: i32) -> (i32, i32, i32) {
    %c0_i32 = arith.constant 0 : i32
    %c0_i32_0 = arith.constant 0 : i32
    %c0_i32_1 = arith.constant 0 : i32
    return %arg0, %c0_i32, %c0_i32_0 : i32, i32, i32
  }
}

</mosaic_0001>

<llo_original>
// kernel: tpu_custom_call.1
$region0: #{tpu_custom_call.1}
  #allocation0 [shape = 'u32[]', space=smem, size = 0x4, offset = 0x4, fixed_abs, tag = 'smem constant byte address 0x4 - core index']
  #allocation1 [shape = 'u32[144,128]{1,0:T(1,128)}', space=vmem, size = 0x12000, scoped, tag = 'internal scratch']
  %s0 = inlined_call_operand.vmem [shape: f32[3,512], index: 0, kind: input, shape index: {}]
  %s1 = inlined_call_operand.vmem [shape: f32[64,3], index: 1, kind: input, shape index: {}]
  %s2 = inlined_call_operand.vmem [shape: f32[64,1], index: 2, kind: input, shape index: {}]
  %s3 = inlined_call_operand.vmem [shape: bf16[128,64], index: 3, kind: input, shape index: {}]
  %s4 = inlined_call_operand.vmem [shape: f32[1,128,1], index: 4, kind: output, shape index: {0}]
  %s5 = inlined_call_operand.vmem [shape: f32[1,128,1], index: 5, kind: output, shape index: {1}]
  %6 = xla_tuple %s4, %s5
  %s7 = sld [smem:[#allocation0]]
  $region34: #{tpu_custom_call.1} parent=0
    _
  %s9 = ssub.s32 1, %s7
  %s10 = scalar_select 0, %s9, %s7
  // Predicated region
  $region2: #{tpu_custom_call.1} parent=0 // pred_check
    _
  $region3: #{tpu_custom_call.1} parent=0 // pred_check_branch
    %12 = sbr.rel (0) target = $region5
  $region4: #{tpu_custom_call.1} parent=0 // pred_region
    _
  $region5: #{tpu_custom_call.1} parent=0 // pred_fallthru
    _
  // Predicated region
  $region6: #{tpu_custom_call.1} parent=0 // pred_check
    _
  $region7: #{tpu_custom_call.1} parent=0 // pred_check_branch
    %14 = sbr.rel (0) target = $region9
  $region8: #{tpu_custom_call.1} parent=0 // pred_region
    _
  $region9: #{tpu_custom_call.1} parent=0 // pred_fallthru
    _
  // Predicated region
  $region10: #{tpu_custom_call.1} parent=0 // pred_check
    _
  $region11: #{tpu_custom_call.1} parent=0 // pred_check_branch
    %16 = sbr.rel (0) target = $region13
  $region12: #{tpu_custom_call.1} parent=0 // pred_region
    _
  $region13: #{tpu_custom_call.1} parent=0 // pred_fallthru
    _
  // Predicated region
  $region14: #{tpu_custom_call.1} parent=0 // pred_check
    _
  $region15: #{tpu_custom_call.1} parent=0 // pred_check_branch
    %18 = sbr.rel (0) target = $region17
  $region16: #{tpu_custom_call.1} parent=0 // pred_region
    _
  $region17: #{tpu_custom_call.1} parent=0 // pred_fallthru
    _
  %v20 = vld [vmem:[%s0] sm:$0x77]
  %v21 = vld [vmem:[%s0 + $0x8] sm:$0x77]
  %v22 = vld [vmem:[%s1] sm:$0xff]
  %v23 = vld [vmem:[%s1 + $0x8] sm:$0xff]
  %v24 = vld [vmem:[%s1 + $0x10] sm:$0xff]
  %v25 = vld [vmem:[%s1 + $0x18] sm:$0xff]
  %v26 = vld [vmem:[%s1 + $0x20] sm:$0xff]
  %v27 = vld [vmem:[%s1 + $0x28] sm:$0xff]
  %v28 = vld [vmem:[%s1 + $0x30] sm:$0xff]
  %v29 = vld [vmem:[%s1 + $0x38] sm:$0xff]
  %v32 = vlaneseq
  %v33 = vshrl.u32 %v32, 7
  %v34 = vsub.s32 0, %v33
  %v35 = vrot.slane %v20, %v34
  %v36 = vlaneseq
  %v37 = vshrl.u32 %v36, 7
  %v38 = vsub.s32 4, %v37
  %v39 = vrot.slane %v20, %v38
  %v40 = vlaneseq
  %v41 = vshrl.u32 %v40, 7
  %v42 = vsub.s32 0, %v41
  %v43 = vrot.slane %v21, %v42
  %v44 = vlaneseq
  %v45 = vshrl.u32 %v44, 7
  %v46 = vsub.s32 4, %v45
  %v47 = vrot.slane %v21, %v46
  %v52 = vlaneseq
  %v53 = vshrl.u32 %v52, 7
  %v54 = vsub.s32 0, %v53
  %v55 = vrot.slane %v35, %v54
  %v56 = vlaneseq
  %v57 = vshrl.u32 %v56, 7
  %v58 = vsub.s32 0, %v57
  %v59 = vrot.slane %v39, %v58
  %v60 = vlaneseq
  %v61 = vshrl.u32 %v60, 7
  %v62 = vsub.s32 0, %v61
  %v63 = vrot.slane %v43, %v62
  %v64 = vlaneseq
  %v65 = vshrl.u32 %v64, 7
  %v66 = vsub.s32 0, %v65
  %v67 = vrot.slane %v47, %v66
  %69 = vset.pattern.permute.xlu0 0
  %70 = vperm.xlu0 %69, %v22
  %v71 = vpop.permute.xlu0 %70
  %74 = vset.pattern.permute.xlu0 0
  %75 = vperm.xlu0 %74, %v23
  %v76 = vpop.permute.xlu0 %75
  %79 = vset.pattern.permute.xlu0 0
  %80 = vperm.xlu0 %79, %v24
  %v81 = vpop.permute.xlu0 %80
  %84 = vset.pattern.permute.xlu0 0
  %85 = vperm.xlu0 %84, %v25
  %v86 = vpop.permute.xlu0 %85
  %89 = vset.pattern.permute.xlu0 0
  %90 = vperm.xlu0 %89, %v26
  %v91 = vpop.permute.xlu0 %90
  %94 = vset.pattern.permute.xlu0 0
  %95 = vperm.xlu0 %94, %v27
  %v96 = vpop.permute.xlu0 %95
  %99 = vset.pattern.permute.xlu0 0
  %100 = vperm.xlu0 %99, %v28
  %v101 = vpop.permute.xlu0 %100
  %104 = vset.pattern.permute.xlu0 0
  %105 = vperm.xlu0 %104, %v29
  %v106 = vpop.permute.xlu0 %105
  %v108 = vmul.f32 %v55, %v71
  %v109 = vmul.f32 %v59, %v71
  %v110 = vmul.f32 %v63, %v71
  %v111 = vmul.f32 %v67, %v71
  %v112 = vmul.f32 %v55, %v76
  %v113 = vmul.f32 %v59, %v76
  %v114 = vmul.f32 %v63, %v76
  %v115 = vmul.f32 %v67, %v76
  %v116 = vmul.f32 %v55, %v81
  %v117 = vmul.f32 %v59, %v81
  %v118 = vmul.f32 %v63, %v81
  %v119 = vmul.f32 %v67, %v81
  %v120 = vmul.f32 %v55, %v86
  %v121 = vmul.f32 %v59, %v86
  %v122 = vmul.f32 %v63, %v86
  %v123 = vmul.f32 %v67, %v86
  %v124 = vmul.f32 %v55, %v91
  %v125 = vmul.f32 %v59, %v91
  %v126 = vmul.f32 %v63, %v91
  %v127 = vmul.f32 %v67, %v91
  %v128 = vmul.f32 %v55, %v96
  %v129 = vmul.f32 %v59, %v96
  %v130 = vmul.f32 %v63, %v96
  %v131 = vmul.f32 %v67, %v96
  %v132 = vmul.f32 %v55, %v101
  %v133 = vmul.f32 %v59, %v101
  %v134 = vmul.f32 %v63, %v101
  %v135 = vmul.f32 %v67, %v101
  %v136 = vmul.f32 %v55, %v106
  %v137 = vmul.f32 %v59, %v106
  %v138 = vmul.f32 %v63, %v106
  %v139 = vmul.f32 %v67, %v106
  %v140 = vlaneseq
  %v141 = vshrl.u32 %v140, 7
  %v142 = vsub.s32 1, %v141
  %v143 = vrot.slane %v20, %v142
  %v144 = vlaneseq
  %v145 = vshrl.u32 %v144, 7
  %v146 = vsub.s32 5, %v145
  %v147 = vrot.slane %v20, %v146
  %v148 = vlaneseq
  %v149 = vshrl.u32 %v148, 7
  %v150 = vsub.s32 1, %v149
  %v151 = vrot.slane %v21, %v150
  %v152 = vlaneseq
  %v153 = vshrl.u32 %v152, 7
  %v154 = vsub.s32 5, %v153
  %v155 = vrot.slane %v21, %v154
  %v160 = vlaneseq
  %v161 = vshrl.u32 %v160, 7
  %v162 = vsub.s32 1, %v161
  %v163 = vrot.slane %v143, %v162
  %v164 = vlaneseq
  %v165 = vshrl.u32 %v164, 7
  %v166 = vsub.s32 1, %v165
  %v167 = vrot.slane %v147, %v166
  %v168 = vlaneseq
  %v169 = vshrl.u32 %v168, 7
  %v170 = vsub.s32 1, %v169
  %v171 = vrot.slane %v151, %v170
  %v172 = vlaneseq
  %v173 = vshrl.u32 %v172, 7
  %v174 = vsub.s32 1, %v173
  %v175 = vrot.slane %v155, %v174
  %176 = vset.pattern.permute.xlu0 1
  %177 = vperm.xlu0 %176, %v22
  %v178 = vpop.permute.xlu0 %177
  %180 = vset.pattern.permute.xlu0 1
  %181 = vperm.xlu0 %180, %v23
  %v182 = vpop.permute.xlu0 %181
  %184 = vset.pattern.permute.xlu0 1
  %185 = vperm.xlu0 %184, %v24
  %v186 = vpop.permute.xlu0 %185
  %188 = vset.pattern.permute.xlu0 1
  %189 = vperm.xlu0 %188, %v25
  %v190 = vpop.permute.xlu0 %189
  %192 = vset.pattern.permute.xlu0 1
  %193 = vperm.xlu0 %192, %v26
  %v194 = vpop.permute.xlu0 %193
  %196 = vset.pattern.permute.xlu0 1
  %197 = vperm.xlu0 %196, %v27
  %v198 = vpop.permute.xlu0 %197
  %200 = vset.pattern.permute.xlu0 1
  %201 = vperm.xlu0 %200, %v28
  %v202 = vpop.permute.xlu0 %201
  %204 = vset.pattern.permute.xlu0 1
  %205 = vperm.xlu0 %204, %v29
  %v206 = vpop.permute.xlu0 %205
  %v208 = vmul.f32 %v163, %v178
  %v209 = vmul.f32 %v167, %v178
  %v210 = vmul.f32 %v171, %v178
  %v211 = vmul.f32 %v175, %v178
  %v212 = vmul.f32 %v163, %v182
  %v213 = vmul.f32 %v167, %v182
  %v214 = vmul.f32 %v171, %v182
  %v215 = vmul.f32 %v175, %v182
  %v216 = vmul.f32 %v163, %v186
  %v217 = vmul.f32 %v167, %v186
  %v218 = vmul.f32 %v171, %v186
  %v219 = vmul.f32 %v175, %v186
  %v220 = vmul.f32 %v163, %v190
  %v221 = vmul.f32 %v167, %v190
  %v222 = vmul.f32 %v171, %v190
  %v223 = vmul.f32 %v175, %v190
  %v224 = vmul.f32 %v163, %v194
  %v225 = vmul.f32 %v167, %v194
  %v226 = vmul.f32 %v171, %v194
  %v227 = vmul.f32 %v175, %v194
  %v228 = vmul.f32 %v163, %v198
  %v229 = vmul.f32 %v167, %v198
  %v230 = vmul.f32 %v171, %v198
  %v231 = vmul.f32 %v175, %v198
  %v232 = vmul.f32 %v163, %v202
  %v233 = vmul.f32 %v167, %v202
  %v234 = vmul.f32 %v171, %v202
  %v235 = vmul.f32 %v175, %v202
  %v236 = vmul.f32 %v163, %v206
  %v237 = vmul.f32 %v167, %v206
  %v238 = vmul.f32 %v171, %v206
  %v239 = vmul.f32 %v175, %v206
  %v240 = vadd.f32 %v108, %v208
  %v241 = vadd.f32 %v109, %v209
  %v242 = vadd.f32 %v110, %v210
  %v243 = vadd.f32 %v111, %v211
  %v244 = vadd.f32 %v112, %v212
  %v245 = vadd.f32 %v113, %v213
  %v246 = vadd.f32 %v114, %v214
  %v247 = vadd.f32 %v115, %v215
  %v248 = vadd.f32 %v116, %v216
  %v249 = vadd.f32 %v117, %v217
  %v250 = vadd.f32 %v118, %v218
  %v251 = vadd.f32 %v119, %v219
  %v252 = vadd.f32 %v120, %v220
  %v253 = vadd.f32 %v121, %v221
  %v254 = vadd.f32 %v122, %v222
  %v255 = vadd.f32 %v123, %v223
  %v256 = vadd.f32 %v124, %v224
  %v257 = vadd.f32 %v125, %v225
  %v258 = vadd.f32 %v126, %v226
  %v259 = vadd.f32 %v127, %v227
  %v260 = vadd.f32 %v128, %v228
  %v261 = vadd.f32 %v129, %v229
  %v262 = vadd.f32 %v130, %v230
  %v263 = vadd.f32 %v131, %v231
  %v264 = vadd.f32 %v132, %v232
  %v265 = vadd.f32 %v133, %v233
  %v266 = vadd.f32 %v134, %v234
  %v267 = vadd.f32 %v135, %v235
  %v268 = vadd.f32 %v136, %v236
  %v269 = vadd.f32 %v137, %v237
  %v270 = vadd.f32 %v138, %v238
  %v271 = vadd.f32 %v139, %v239
  %v272 = vlaneseq
  %v273 = vshrl.u32 %v272, 7
  %v274 = vsub.s32 2, %v273
  %v275 = vrot.slane %v20, %v274
  %v276 = vlaneseq
  %v277 = vshrl.u32 %v276, 7
  %v278 = vsub.s32 6, %v277
  %v279 = vrot.slane %v20, %v278
  %v280 = vlaneseq
  %v281 = vshrl.u32 %v280, 7
  %v282 = vsub.s32 2, %v281
  %v283 = vrot.slane %v21, %v282
  %v284 = vlaneseq
  %v285 = vshrl.u32 %v284, 7
  %v286 = vsub.s32 6, %v285
  %v287 = vrot.slane %v21, %v286
  %v292 = vlaneseq
  %v293 = vshrl.u32 %v292, 7
  %v294 = vsub.s32 2, %v293
  %v295 = vrot.slane %v275, %v294
  %v296 = vlaneseq
  %v297 = vshrl.u32 %v296, 7
  %v298 = vsub.s32 2, %v297
  %v299 = vrot.slane %v279, %v298
  %v300 = vlaneseq
  %v301 = vshrl.u32 %v300, 7
  %v302 = vsub.s32 2, %v301
  %v303 = vrot.slane %v283, %v302
  %v304 = vlaneseq
  %v305 = vshrl.u32 %v304, 7
  %v306 = vsub.s32 2, %v305
  %v307 = vrot.slane %v287, %v306
  %308 = vset.pattern.permute.xlu0 2
  %309 = vperm.xlu0 %308, %v22
  %v310 = vpop.permute.xlu0 %309
  %312 = vset.pattern.permute.xlu0 2
  %313 = vperm.xlu0 %312, %v23
  %v314 = vpop.permute.xlu0 %313
  %316 = vset.pattern.permute.xlu0 2
  %317 = vperm.xlu0 %316, %v24
  %v318 = vpop.permute.xlu0 %317
  %320 = vset.pattern.permute.xlu0 2
  %321 = vperm.xlu0 %320, %v25
  %v322 = vpop.permute.xlu0 %321
  %324 = vset.pattern.permute.xlu0 2
  %325 = vperm.xlu0 %324, %v26
  %v326 = vpop.permute.xlu0 %325
  %328 = vset.pattern.permute.xlu0 2
  %329 = vperm.xlu0 %328, %v27
  %v330 = vpop.permute.xlu0 %329
  %332 = vset.pattern.permute.xlu0 2
  %333 = vperm.xlu0 %332, %v28
  %v334 = vpop.permute.xlu0 %333
  %336 = vset.pattern.permute.xlu0 2
  %337 = vperm.xlu0 %336, %v29
  %v338 = vpop.permute.xlu0 %337
  %v340 = vmul.f32 %v295, %v310
  %v341 = vmul.f32 %v299, %v310
  %v342 = vmul.f32 %v303, %v310
  %v343 = vmul.f32 %v307, %v310
  %v344 = vmul.f32 %v295, %v314
  %v345 = vmul.f32 %v299, %v314
  %v346 = vmul.f32 %v303, %v314
  %v347 = vmul.f32 %v307, %v314
  %v348 = vmul.f32 %v295, %v318
  %v349 = vmul.f32 %v299, %v318
  %v350 = vmul.f32 %v303, %v318
  %v351 = vmul.f32 %v307, %v318
  %v352 = vmul.f32 %v295, %v322
  %v353 = vmul.f32 %v299, %v322
  %v354 = vmul.f32 %v303, %v322
  %v355 = vmul.f32 %v307, %v322
  %v356 = vmul.f32 %v295, %v326
  %v357 = vmul.f32 %v299, %v326
  %v358 = vmul.f32 %v303, %v326
  %v359 = vmul.f32 %v307, %v326
  %v360 = vmul.f32 %v295, %v330
  %v361 = vmul.f32 %v299, %v330
  %v362 = vmul.f32 %v303, %v330
  %v363 = vmul.f32 %v307, %v330
  %v364 = vmul.f32 %v295, %v334
  %v365 = vmul.f32 %v299, %v334
  %v366 = vmul.f32 %v303, %v334
  %v367 = vmul.f32 %v307, %v334
  %v368 = vmul.f32 %v295, %v338
  %v369 = vmul.f32 %v299, %v338
  %v370 = vmul.f32 %v303, %v338
  %v371 = vmul.f32 %v307, %v338
  %v372 = vadd.f32 %v240, %v340
  %v373 = vadd.f32 %v241, %v341
  %v374 = vadd.f32 %v242, %v342
  %v375 = vadd.f32 %v243, %v343
  %v376 = vadd.f32 %v244, %v344
  %v377 = vadd.f32 %v245, %v345
  %v378 = vadd.f32 %v246, %v346
  %v379 = vadd.f32 %v247, %v347
  %v380 = vadd.f32 %v248, %v348
  %v381 = vadd.f32 %v249, %v349
  %v382 = vadd.f32 %v250, %v350
  %v383 = vadd.f32 %v251, %v351
  %v384 = vadd.f32 %v252, %v352
  %v385 = vadd.f32 %v253, %v353
  %v386 = vadd.f32 %v254, %v354
  %v387 = vadd.f32 %v255, %v355
  %v388 = vadd.f32 %v256, %v356
  %v389 = vadd.f32 %v257, %v357
  %v390 = vadd.f32 %v258, %v358
  %v391 = vadd.f32 %v259, %v359
  %v392 = vadd.f32 %v260, %v360
  %v393 = vadd.f32 %v261, %v361
  %v394 = vadd.f32 %v262, %v362
  %v395 = vadd.f32 %v263, %v363
  %v396 = vadd.f32 %v264, %v364
  %v397 = vadd.f32 %v265, %v365
  %v398 = vadd.f32 %v266, %v366
  %v399 = vadd.f32 %v267, %v367
  %v400 = vadd.f32 %v268, %v368
  %v401 = vadd.f32 %v269, %v369
  %v402 = vadd.f32 %v270, %v370
  %v403 = vadd.f32 %v271, %v371
  %v404 = vld [vmem:[%s2] sm:$0xff]
  %v405 = vld [vmem:[%s2 + $0x8] sm:$0xff]
  %v406 = vld [vmem:[%s2 + $0x10] sm:$0xff]
  %v407 = vld [vmem:[%s2 + $0x18] sm:$0xff]
  %v408 = vld [vmem:[%s2 + $0x20] sm:$0xff]
  %v409 = vld [vmem:[%s2 + $0x28] sm:$0xff]
  %v410 = vld [vmem:[%s2 + $0x30] sm:$0xff]
  %v411 = vld [vmem:[%s2 + $0x38] sm:$0xff]
  %413 = vset.pattern.permute.xlu0 0
  %414 = vperm.xlu0 %413, %v404
  %v415 = vpop.permute.xlu0 %414
  %418 = vset.pattern.permute.xlu0 0
  %419 = vperm.xlu0 %418, %v405
  %v420 = vpop.permute.xlu0 %419
  %423 = vset.pattern.permute.xlu0 0
  %424 = vperm.xlu0 %423, %v406
  %v425 = vpop.permute.xlu0 %424
  %428 = vset.pattern.permute.xlu0 0
  %429 = vperm.xlu0 %428, %v407
  %v430 = vpop.permute.xlu0 %429
  %433 = vset.pattern.permute.xlu0 0
  %434 = vperm.xlu0 %433, %v408
  %v435 = vpop.permute.xlu0 %434
  %438 = vset.pattern.permute.xlu0 0
  %439 = vperm.xlu0 %438, %v409
  %v440 = vpop.permute.xlu0 %439
  %443 = vset.pattern.permute.xlu0 0
  %444 = vperm.xlu0 %443, %v410
  %v445 = vpop.permute.xlu0 %444
  %448 = vset.pattern.permute.xlu0 0
  %449 = vperm.xlu0 %448, %v411
  %v450 = vpop.permute.xlu0 %449
  %v452 = vadd.f32 %v372, %v415
  %v453 = vadd.f32 %v373, %v415
  %v454 = vadd.f32 %v374, %v415
  %v455 = vadd.f32 %v375, %v415
  %v456 = vadd.f32 %v376, %v420
  %v457 = vadd.f32 %v377, %v420
  %v458 = vadd.f32 %v378, %v420
  %v459 = vadd.f32 %v379, %v420
  %v460 = vadd.f32 %v380, %v425
  %v461 = vadd.f32 %v381, %v425
  %v462 = vadd.f32 %v382, %v425
  %v463 = vadd.f32 %v383, %v425
  %v464 = vadd.f32 %v384, %v430
  %v465 = vadd.f32 %v385, %v430
  %v466 = vadd.f32 %v386, %v430
  %v467 = vadd.f32 %v387, %v430
  %v468 = vadd.f32 %v388, %v435
  %v469 = vadd.f32 %v389, %v435
  %v470 = vadd.f32 %v390, %v435
  %v471 = vadd.f32 %v391, %v435
  %v472 = vadd.f32 %v392, %v440
  %v473 = vadd.f32 %v393, %v440
  %v474 = vadd.f32 %v394, %v440
  %v475 = vadd.f32 %v395, %v440
  %v476 = vadd.f32 %v396, %v445
  %v477 = vadd.f32 %v397, %v445
  %v478 = vadd.f32 %v398, %v445
  %v479 = vadd.f32 %v399, %v445
  %v480 = vadd.f32 %v400, %v450
  %v481 = vadd.f32 %v401, %v450
  %v482 = vadd.f32 %v402, %v450
  %v483 = vadd.f32 %v403, %v450
  %vm484 = vcmp.ge.f32.partialorder %v452, 0.0
  %vm485 = vcmp.ge.f32.partialorder %v453, 0.0
  %vm486 = vcmp.ge.f32.partialorder %v454, 0.0
  %vm487 = vcmp.ge.f32.partialorder %v455, 0.0
  %vm488 = vcmp.ge.f32.partialorder %v456, 0.0
  %vm489 = vcmp.ge.f32.partialorder %v457, 0.0
  %vm490 = vcmp.ge.f32.partialorder %v458, 0.0
  %vm491 = vcmp.ge.f32.partialorder %v459, 0.0
  %vm492 = vcmp.ge.f32.partialorder %v460, 0.0
  %vm493 = vcmp.ge.f32.partialorder %v461, 0.0
  %vm494 = vcmp.ge.f32.partialorder %v462, 0.0
  %vm495 = vcmp.ge.f32.partialorder %v463, 0.0
  %vm496 = vcmp.ge.f32.partialorder %v464, 0.0
  %vm497 = vcmp.ge.f32.partialorder %v465, 0.0
  %vm498 = vcmp.ge.f32.partialorder %v466, 0.0
  %vm499 = vcmp.ge.f32.partialorder %v467, 0.0
  %vm500 = vcmp.ge.f32.partialorder %v468, 0.0
  %vm501 = vcmp.ge.f32.partialorder %v469, 0.0
  %vm502 = vcmp.ge.f32.partialorder %v470, 0.0
  %vm503 = vcmp.ge.f32.partialorder %v471, 0.0
  %vm504 = vcmp.ge.f32.partialorder %v472, 0.0
  %vm505 = vcmp.ge.f32.partialorder %v473, 0.0
  %vm506 = vcmp.ge.f32.partialorder %v474, 0.0
  %vm507 = vcmp.ge.f32.partialorder %v475, 0.0
  %vm508 = vcmp.ge.f32.partialorder %v476, 0.0
  %vm509 = vcmp.ge.f32.partialorder %v477, 0.0
  %vm510 = vcmp.ge.f32.partialorder %v478, 0.0
  %vm511 = vcmp.ge.f32.partialorder %v479, 0.0
  %vm512 = vcmp.ge.f32.partialorder %v480, 0.0
  %vm513 = vcmp.ge.f32.partialorder %v481, 0.0
  %vm514 = vcmp.ge.f32.partialorder %v482, 0.0
  %vm515 = vcmp.ge.f32.partialorder %v483, 0.0
  %v516 = vmul.f32 %v452, 0.2
  %v517 = vmul.f32 %v453, 0.2
  %v518 = vmul.f32 %v454, 0.2
  %v519 = vmul.f32 %v455, 0.2
  %v520 = vmul.f32 %v456, 0.2
  %v521 = vmul.f32 %v457, 0.2
  %v522 = vmul.f32 %v458, 0.2
  %v523 = vmul.f32 %v459, 0.2
  %v524 = vmul.f32 %v460, 0.2
  %v525 = vmul.f32 %v461, 0.2
  %v526 = vmul.f32 %v462, 0.2
  %v527 = vmul.f32 %v463, 0.2
  %v528 = vmul.f32 %v464, 0.2
  %v529 = vmul.f32 %v465, 0.2
  %v530 = vmul.f32 %v466, 0.2
  %v531 = vmul.f32 %v467, 0.2
  %v532 = vmul.f32 %v468, 0.2
  %v533 = vmul.f32 %v469, 0.2
  %v534 = vmul.f32 %v470, 0.2
  %v535 = vmul.f32 %v471, 0.2
  %v536 = vmul.f32 %v472, 0.2
  %v537 = vmul.f32 %v473, 0.2
  %v538 = vmul.f32 %v474, 0.2
  %v539 = vmul.f32 %v475, 0.2
  %v540 = vmul.f32 %v476, 0.2
  %v541 = vmul.f32 %v477, 0.2
  %v542 = vmul.f32 %v478, 0.2
  %v543 = vmul.f32 %v479, 0.2
  %v544 = vmul.f32 %v480, 0.2
  %v545 = vmul.f32 %v481, 0.2
  %v546 = vmul.f32 %v482, 0.2
  %v547 = vmul.f32 %v483, 0.2
  %v548 = vsel %vm484, %v452, %v516
  %v549 = vsel %vm485, %v453, %v517
  %v550 = vsel %vm486, %v454, %v518
  %v551 = vsel %vm487, %v455, %v519
  %v552 = vsel %vm488, %v456, %v520
  %v553 = vsel %vm489, %v457, %v521
  %v554 = vsel %vm490, %v458, %v522
  %v555 = vsel %vm491, %v459, %v523
  %v556 = vsel %vm492, %v460, %v524
  %v557 = vsel %vm493, %v461, %v525
  %v558 = vsel %vm494, %v462, %v526
  %v559 = vsel %vm495, %v463, %v527
  %v560 = vsel %vm496, %v464, %v528
  %v561 = vsel %vm497, %v465, %v529
  %v562 = vsel %vm498, %v466, %v530
  %v563 = vsel %vm499, %v467, %v531
  %v564 = vsel %vm500, %v468, %v532
  %v565 = vsel %vm501, %v469, %v533
  %v566 = vsel %vm502, %v470, %v534
  %v567 = vsel %vm503, %v471, %v535
  %v568 = vsel %vm504, %v472, %v536
  %v569 = vsel %vm505, %v473, %v537
  %v570 = vsel %vm506, %v474, %v538
  %v571 = vsel %vm507, %v475, %v539
  %v572 = vsel %vm508, %v476, %v540
  %v573 = vsel %vm509, %v477, %v541
  %v574 = vsel %vm510, %v478, %v542
  %v575 = vsel %vm511, %v479, %v543
  %v576 = vsel %vm512, %v480, %v544
  %v577 = vsel %vm513, %v481, %v545
  %v578 = vsel %vm514, %v482, %v546
  %v579 = vsel %vm515, %v483, %v547
  %v580 = vld [vmem:[%s3] sm:$0xf]
  %v581 = vld [vmem:[%s3 + $0x4] sm:$0xf]
  %v582 = vld [vmem:[%s3 + $0x8] sm:$0xf]
  %v583 = vld [vmem:[%s3 + $0xc] sm:$0xf]
  %v584 = vld [vmem:[%s3 + $0x10] sm:$0xf]
  %v585 = vld [vmem:[%s3 + $0x14] sm:$0xf]
  %v586 = vld [vmem:[%s3 + $0x18] sm:$0xf]
  %v587 = vld [vmem:[%s3 + $0x1c] sm:$0xf]
  %v588 = vld [vmem:[%s3 + $0x20] sm:$0xf]
  %v589 = vld [vmem:[%s3 + $0x24] sm:$0xf]
  %v590 = vld [vmem:[%s3 + $0x28] sm:$0xf]
  %v591 = vld [vmem:[%s3 + $0x2c] sm:$0xf]
  %v592 = vld [vmem:[%s3 + $0x30] sm:$0xf]
  %v593 = vld [vmem:[%s3 + $0x34] sm:$0xf]
  %v594 = vld [vmem:[%s3 + $0x38] sm:$0xf]
  %v595 = vld [vmem:[%s3 + $0x3c] sm:$0xf]
  %v596 = vpack.c.bf16 %v552, %v548
  %v597 = vpack.c.bf16 %v553, %v549
  %v598 = vpack.c.bf16 %v554, %v550
  %v599 = vpack.c.bf16 %v555, %v551
  %v600 = vpack.c.bf16 %v560, %v556
  %v601 = vpack.c.bf16 %v561, %v557
  %v602 = vpack.c.bf16 %v562, %v558
  %v603 = vpack.c.bf16 %v563, %v559
  %v604 = vpack.c.bf16 %v568, %v564
  %v605 = vpack.c.bf16 %v569, %v565
  %v606 = vpack.c.bf16 %v570, %v566
  %v607 = vpack.c.bf16 %v571, %v567
  %v608 = vpack.c.bf16 %v576, %v572
  %v609 = vpack.c.bf16 %v577, %v573
  %v610 = vpack.c.bf16 %v578, %v574
  %v611 = vpack.c.bf16 %v579, %v575
  %v628 = vunpack.c.l.b16 %v580
  %v629 = vunpack.c.l.b16 %v581
  %v630 = vunpack.c.l.b16 %v582
  %v631 = vunpack.c.l.b16 %v583
  %v632 = vunpack.c.l.b16 %v584
  %v633 = vunpack.c.l.b16 %v585
  %v634 = vunpack.c.l.b16 %v586
  %v635 = vunpack.c.l.b16 %v587
  %v636 = vunpack.c.l.b16 %v588
  %v637 = vunpack.c.l.b16 %v589
  %v638 = vunpack.c.l.b16 %v590
  %v639 = vunpack.c.l.b16 %v591
  %v640 = vunpack.c.l.b16 %v592
  %v641 = vunpack.c.l.b16 %v593
  %v642 = vunpack.c.l.b16 %v594
  %v643 = vunpack.c.l.b16 %v595
  %v644 = vpack.c.b16 %v629, %v628
  %v645 = vpack.c.b16 %v631, %v630
  %v646 = vpack.c.b16 %v633, %v632
  %v647 = vpack.c.b16 %v635, %v634
  %v648 = vpack.c.b16 %v637, %v636
  %v649 = vpack.c.b16 %v639, %v638
  %v650 = vpack.c.b16 %v641, %v640
  %v651 = vpack.c.b16 %v643, %v642
  %vm652 = vcmask 523264
  %v654 = vsel %vm652, %v644, 0
  %v657 = vsel %vm652, %v645, 0
  %v660 = vsel %vm652, %v646, 0
  %v663 = vsel %vm652, %v647, 0
  %v666 = vsel %vm652, %v648, 0
  %v669 = vsel %vm652, %v649, 0
  %v672 = vsel %vm652, %v650, 0
  %v675 = vsel %vm652, %v651, 0
  %677 = vmatprep.subr.bf16.mxu0 0
  %678 = vmatpush1.bf16.msra.mxu0 0
  %679 = vmatprep.subr.bf16.mxu0 0
  %680 = vmatpush1.bf16.msra.mxu0 0
  %681 = vmatprep.subr.bf16.mxu0 0
  %682 = vmatpush1.bf16.msra.mxu0 0
  %683 = vmatprep.subr.bf16.mxu0 0
  %684 = vmatpush1.bf16.msra.mxu0 0
  %685 = vmatprep.subr.bf16.mxu0 %v609
  %686 = vmatpush1.bf16.msra.mxu0 %v608
  %687 = vmatprep.subr.bf16.mxu0 %v605
  %688 = vmatpush1.bf16.msra.mxu0 %v604
  %689 = vmatprep.subr.bf16.mxu0 %v601
  %690 = vmatpush1.bf16.msra.mxu0 %v600
  %691 = vmatprep.subr.bf16.mxu0 %v597
  %692 = vmatpush1.bf16.msra.mxu0 %v596
  %693 = vmatprep.subr.bf16.mxu0 0
  %694 = vmatpush2.bf16.msra.mxu0 0
  %695 = vmatprep.subr.bf16.mxu0 0
  %696 = vmatpush2.bf16.msra.mxu0 0
  %697 = vmatprep.subr.bf16.mxu0 0
  %698 = vmatpush2.bf16.msra.mxu0 0
  %699 = vmatprep.subr.bf16.mxu0 0
  %700 = vmatpush2.bf16.msra.mxu0 0
  %701 = vmatprep.subr.bf16.mxu0 0
  %702 = vmatpush2.bf16.msra.mxu0 0
  %703 = vmatprep.subr.bf16.mxu0 0
  %704 = vmatpush2.bf16.msra.mxu0 0
  %705 = vmatprep.subr.bf16.mxu0 0
  %706 = vmatpush2.bf16.msra.mxu0 0
  %707 = vmatprep.subr.bf16.mxu0 0
  %708 = vmatpush2.bf16.msra.mxu0 0
  %709 = vmatprep.mubr.bf16.mxu0 0
  %710 = vmatmul.mubr.bf16.gmra.mxu0 %v654
  %v711 = vpop.f32.mrf.mxu0
  %v712 = vadd.f32 0.0, %v711
  %v713 = vpop.f32.mrf.mxu0
  %v714 = vadd.f32 0.0, %v713
  %v715 = vpop.f32.mrf.mxu0
  %v716 = vadd.f32 0.0, %v715
  %v717 = vpop.f32.mrf.mxu0
  %v718 = vadd.f32 0.0, %v717
  %719 = vmatprep.mubr.bf16.mxu0 0
  %720 = vmatmul.mubr.bf16.gmra.mxu0 %v657
  %v721 = vpop.f32.mrf.mxu0
  %v722 = vadd.f32 0.0, %v721
  %v723 = vpop.f32.mrf.mxu0
  %v724 = vadd.f32 0.0, %v723
  %v725 = vpop.f32.mrf.mxu0
  %v726 = vadd.f32 0.0, %v725
  %v727 = vpop.f32.mrf.mxu0
  %v728 = vadd.f32 0.0, %v727
  %729 = vmatprep.mubr.bf16.mxu0 0
  %730 = vmatmul.mubr.bf16.gmra.mxu0 %v660
  %v731 = vpop.f32.mrf.mxu0
  %v732 = vadd.f32 0.0, %v731
  %v733 = vpop.f32.mrf.mxu0
  %v734 = vadd.f32 0.0, %v733
  %v735 = vpop.f32.mrf.mxu0
  %v736 = vadd.f32 0.0, %v735
  %v737 = vpop.f32.mrf.mxu0
  %v738 = vadd.f32 0.0, %v737
  %739 = vmatprep.mubr.bf16.mxu0 0
  %740 = vmatmul.mubr.bf16.gmra.mxu0 %v663
  %v741 = vpop.f32.mrf.mxu0
  %v742 = vadd.f32 0.0, %v741
  %v743 = vpop.f32.mrf.mxu0
  %v744 = vadd.f32 0.0, %v743
  %v745 = vpop.f32.mrf.mxu0
  %v746 = vadd.f32 0.0, %v745
  %v747 = vpop.f32.mrf.mxu0
  %v748 = vadd.f32 0.0, %v747
  %749 = vmatprep.mubr.bf16.mxu0 0
  %750 = vmatmul.mubr.bf16.gmra.mxu0 %v666
  %v751 = vpop.f32.mrf.mxu0
  %v752 = vadd.f32 0.0, %v751
  %v753 = vpop.f32.mrf.mxu0
  %v754 = vadd.f32 0.0, %v753
  %v755 = vpop.f32.mrf.mxu0
  %v756 = vadd.f32 0.0, %v755
  %v757 = vpop.f32.mrf.mxu0
  %v758 = vadd.f32 0.0, %v757
  %759 = vmatprep.mubr.bf16.mxu0 0
  %760 = vmatmul.mubr.bf16.gmra.mxu0 %v669
  %v761 = vpop.f32.mrf.mxu0
  %v762 = vadd.f32 0.0, %v761
  %v763 = vpop.f32.mrf.mxu0
  %v764 = vadd.f32 0.0, %v763
  %v765 = vpop.f32.mrf.mxu0
  %v766 = vadd.f32 0.0, %v765
  %v767 = vpop.f32.mrf.mxu0
  %v768 = vadd.f32 0.0, %v767
  %769 = vmatprep.mubr.bf16.mxu0 0
  %770 = vmatmul.mubr.bf16.gmra.mxu0 %v672
  %v771 = vpop.f32.mrf.mxu0
  %v772 = vadd.f32 0.0, %v771
  %v773 = vpop.f32.mrf.mxu0
  %v774 = vadd.f32 0.0, %v773
  %v775 = vpop.f32.mrf.mxu0
  %v776 = vadd.f32 0.0, %v775
  %v777 = vpop.f32.mrf.mxu0
  %v778 = vadd.f32 0.0, %v777
  %779 = vmatprep.mubr.bf16.mxu0 0
  %780 = vmatmul.mubr.bf16.gmra.mxu0 %v675
  %v781 = vpop.f32.mrf.mxu0
  %v782 = vadd.f32 0.0, %v781
  %v783 = vpop.f32.mrf.mxu0
  %v784 = vadd.f32 0.0, %v783
  %v785 = vpop.f32.mrf.mxu0
  %v786 = vadd.f32 0.0, %v785
  %v787 = vpop.f32.mrf.mxu0
  %v788 = vadd.f32 0.0, %v787
  %789 = vdwg.mxu0
  %790 = vmatprep.subr.bf16.mxu0 0
  %791 = vmatpush1.bf16.msra.mxu0 0
  %792 = vmatprep.subr.bf16.mxu0 0
  %793 = vmatpush1.bf16.msra.mxu0 0
  %794 = vmatprep.subr.bf16.mxu0 0
  %795 = vmatpush1.bf16.msra.mxu0 0
  %796 = vmatprep.subr.bf16.mxu0 0
  %797 = vmatpush1.bf16.msra.mxu0 0
  %798 = vmatprep.subr.bf16.mxu0 %v611
  %799 = vmatpush1.bf16.msra.mxu0 %v610
  %800 = vmatprep.subr.bf16.mxu0 %v607
  %801 = vmatpush1.bf16.msra.mxu0 %v606
  %802 = vmatprep.subr.bf16.mxu0 %v603
  %803 = vmatpush1.bf16.msra.mxu0 %v602
  %804 = vmatprep.subr.bf16.mxu0 %v599
  %805 = vmatpush1.bf16.msra.mxu0 %v598
  %806 = vmatprep.subr.bf16.mxu0 0
  %807 = vmatpush2.bf16.msra.mxu0 0
  %808 = vmatprep.subr.bf16.mxu0 0
  %809 = vmatpush2.bf16.msra.mxu0 0
  %810 = vmatprep.subr.bf16.mxu0 0
  %811 = vmatpush2.bf16.msra.mxu0 0
  %812 = vmatprep.subr.bf16.mxu0 0
  %813 = vmatpush2.bf16.msra.mxu0 0
  %814 = vmatprep.subr.bf16.mxu0 0
  %815 = vmatpush2.bf16.msra.mxu0 0
  %816 = vmatprep.subr.bf16.mxu0 0
  %817 = vmatpush2.bf16.msra.mxu0 0
  %818 = vmatprep.subr.bf16.mxu0 0
  %819 = vmatpush2.bf16.msra.mxu0 0
  %820 = vmatprep.subr.bf16.mxu0 0
  %821 = vmatpush2.bf16.msra.mxu0 0
  %822 = vmatprep.mubr.bf16.mxu0 0
  %823 = vmatmul.mubr.bf16.gmra.mxu0 %v654
  %v824 = vpop.f32.mrf.mxu0
  %v825 = vadd.f32 0.0, %v824
  %v826 = vpop.f32.mrf.mxu0
  %v827 = vadd.f32 0.0, %v826
  %v828 = vpop.f32.mrf.mxu0
  %v829 = vadd.f32 0.0, %v828
  %v830 = vpop.f32.mrf.mxu0
  %v831 = vadd.f32 0.0, %v830
  %832 = vmatprep.mubr.bf16.mxu0 0
  %833 = vmatmul.mubr.bf16.gmra.mxu0 %v657
  %v834 = vpop.f32.mrf.mxu0
  %v835 = vadd.f32 0.0, %v834
  %v836 = vpop.f32.mrf.mxu0
  %v837 = vadd.f32 0.0, %v836
  %v838 = vpop.f32.mrf.mxu0
  %v839 = vadd.f32 0.0, %v838
  %v840 = vpop.f32.mrf.mxu0
  %v841 = vadd.f32 0.0, %v840
  %842 = vmatprep.mubr.bf16.mxu0 0
  %843 = vmatmul.mubr.bf16.gmra.mxu0 %v660
  %v844 = vpop.f32.mrf.mxu0
  %v845 = vadd.f32 0.0, %v844
  %v846 = vpop.f32.mrf.mxu0
  %v847 = vadd.f32 0.0, %v846
  %v848 = vpop.f32.mrf.mxu0
  %v849 = vadd.f32 0.0, %v848
  %v850 = vpop.f32.mrf.mxu0
  %v851 = vadd.f32 0.0, %v850
  %852 = vmatprep.mubr.bf16.mxu0 0
  %853 = vmatmul.mubr.bf16.gmra.mxu0 %v663
  %v854 = vpop.f32.mrf.mxu0
  %v855 = vadd.f32 0.0, %v854
  %v856 = vpop.f32.mrf.mxu0
  %v857 = vadd.f32 0.0, %v856
  %v858 = vpop.f32.mrf.mxu0
  %v859 = vadd.f32 0.0, %v858
  %v860 = vpop.f32.mrf.mxu0
  %v861 = vadd.f32 0.0, %v860
  %862 = vmatprep.mubr.bf16.mxu0 0
  %863 = vmatmul.mubr.bf16.gmra.mxu0 %v666
  %v864 = vpop.f32.mrf.mxu0
  %v865 = vadd.f32 0.0, %v864
  %v866 = vpop.f32.mrf.mxu0
  %v867 = vadd.f32 0.0, %v866
  %v868 = vpop.f32.mrf.mxu0
  %v869 = vadd.f32 0.0, %v868
  %v870 = vpop.f32.mrf.mxu0
  %v871 = vadd.f32 0.0, %v870
  %872 = vmatprep.mubr.bf16.mxu0 0
  %873 = vmatmul.mubr.bf16.gmra.mxu0 %v669
  %v874 = vpop.f32.mrf.mxu0
  %v875 = vadd.f32 0.0, %v874
  %v876 = vpop.f32.mrf.mxu0
  %v877 = vadd.f32 0.0, %v876
  %v878 = vpop.f32.mrf.mxu0
  %v879 = vadd.f32 0.0, %v878
  %v880 = vpop.f32.mrf.mxu0
  %v881 = vadd.f32 0.0, %v880
  %882 = vmatprep.mubr.bf16.mxu0 0
  %883 = vmatmul.mubr.bf16.gmra.mxu0 %v672
  %v884 = vpop.f32.mrf.mxu0
  %v885 = vadd.f32 0.0, %v884
  %v886 = vpop.f32.mrf.mxu0
  %v887 = vadd.f32 0.0, %v886
  %v888 = vpop.f32.mrf.mxu0
  %v889 = vadd.f32 0.0, %v888
  %v890 = vpop.f32.mrf.mxu0
  %v891 = vadd.f32 0.0, %v890
  %892 = vmatprep.mubr.bf16.mxu0 0
  %893 = vmatmul.mubr.bf16.gmra.mxu0 %v675
  %v894 = vpop.f32.mrf.mxu0
  %v895 = vadd.f32 0.0, %v894
  %v896 = vpop.f32.mrf.mxu0
  %v897 = vadd.f32 0.0, %v896
  %v898 = vpop.f32.mrf.mxu0
  %v899 = vadd.f32 0.0, %v898
  %v900 = vpop.f32.mrf.mxu0
  %v901 = vadd.f32 0.0, %v900
  %902 = vdwg.mxu0
  %v903 = vadd.f32 %v712, %v714
  %v904 = vadd.f32 %v903, %v825
  %v905 = vadd.f32 %v904, %v827
  %906 = vadd.xlane.f32.xlu0 %v905
  %v907 = vpop.xlane.xlu0 %906
  %v908 = vadd.f32 %v716, %v718
  %v909 = vadd.f32 %v908, %v829
  %v910 = vadd.f32 %v909, %v831
  %911 = vadd.xlane.f32.xlu0 %v910
  %v912 = vpop.xlane.xlu0 %911
  %v913 = vadd.f32 %v722, %v724
  %v914 = vadd.f32 %v913, %v835
  %v915 = vadd.f32 %v914, %v837
  %916 = vadd.xlane.f32.xlu0 %v915
  %v917 = vpop.xlane.xlu0 %916
  %v918 = vadd.f32 %v726, %v728
  %v919 = vadd.f32 %v918, %v839
  %v920 = vadd.f32 %v919, %v841
  %921 = vadd.xlane.f32.xlu0 %v920
  %v922 = vpop.xlane.xlu0 %921
  %v923 = vadd.f32 %v732, %v734
  %v924 = vadd.f32 %v923, %v845
  %v925 = vadd.f32 %v924, %v847
  %926 = vadd.xlane.f32.xlu0 %v925
  %v927 = vpop.xlane.xlu0 %926
  %v928 = vadd.f32 %v736, %v738
  %v929 = vadd.f32 %v928, %v849
  %v930 = vadd.f32 %v929, %v851
  %931 = vadd.xlane.f32.xlu0 %v930
  %v932 = vpop.xlane.xlu0 %931
  %v933 = vadd.f32 %v742, %v744
  %v934 = vadd.f32 %v933, %v855
  %v935 = vadd.f32 %v934, %v857
  %936 = vadd.xlane.f32.xlu0 %v935
  %v937 = vpop.xlane.xlu0 %936
  %v938 = vadd.f32 %v746, %v748
  %v939 = vadd.f32 %v938, %v859
  %v940 = vadd.f32 %v939, %v861
  %941 = vadd.xlane.f32.xlu0 %v940
  %v942 = vpop.xlane.xlu0 %941
  %v943 = vadd.f32 %v752, %v754
  %v944 = vadd.f32 %v943, %v865
  %v945 = vadd.f32 %v944, %v867
  %946 = vadd.xlane.f32.xlu0 %v945
  %v947 = vpop.xlane.xlu0 %946
  %v948 = vadd.f32 %v756, %v758
  %v949 = vadd.f32 %v948, %v869
  %v950 = vadd.f32 %v949, %v871
  %951 = vadd.xlane.f32.xlu0 %v950
  %v952 = vpop.xlane.xlu0 %951
  %v953 = vadd.f32 %v762, %v764
  %v954 = vadd.f32 %v953, %v875
  %v955 = vadd.f32 %v954, %v877
  %956 = vadd.xlane.f32.xlu0 %v955
  %v957 = vpop.xlane.xlu0 %956
  %v958 = vadd.f32 %v766, %v768
  %v959 = vadd.f32 %v958, %v879
  %v960 = vadd.f32 %v959, %v881
  %961 = vadd.xlane.f32.xlu0 %v960
  %v962 = vpop.xlane.xlu0 %961
  %v963 = vadd.f32 %v772, %v774
  %v964 = vadd.f32 %v963, %v885
  %v965 = vadd.f32 %v964, %v887
  %966 = vadd.xlane.f32.xlu0 %v965
  %v967 = vpop.xlane.xlu0 %966
  %v968 = vadd.f32 %v776, %v778
  %v969 = vadd.f32 %v968, %v889
  %v970 = vadd.f32 %v969, %v891
  %971 = vadd.xlane.f32.xlu0 %v970
  %v972 = vpop.xlane.xlu0 %971
  %v973 = vadd.f32 %v782, %v784
  %v974 = vadd.f32 %v973, %v895
  %v975 = vadd.f32 %v974, %v897
  %976 = vadd.xlane.f32.xlu0 %v975
  %v977 = vpop.xlane.xlu0 %976
  %v978 = vadd.f32 %v786, %v788
  %v979 = vadd.f32 %v978, %v899
  %v980 = vadd.f32 %v979, %v901
  %981 = vadd.xlane.f32.xlu0 %v980
  %v982 = vpop.xlane.xlu0 %981
  %vm983 = vcmask 7168
  %984 = vst.msk [vmem:[%s4] sm:$0xff] %vm983, %v907
  %985 = vst.msk [vmem:[%s4 + $0x8] sm:$0xff] %vm983, %v912
  %986 = vst.msk [vmem:[%s4 + $0x10] sm:$0xff] %vm983, %v917
  %987 = vst.msk [vmem:[%s4 + $0x18] sm:$0xff] %vm983, %v922
  %988 = vst.msk [vmem:[%s4 + $0x20] sm:$0xff] %vm983, %v927
  %989 = vst.msk [vmem:[%s4 + $0x28] sm:$0xff] %vm983, %v932
  %990 = vst.msk [vmem:[%s4 + $0x30] sm:$0xff] %vm983, %v937
  %991 = vst.msk [vmem:[%s4 + $0x38] sm:$0xff] %vm983, %v942
  %992 = vst.msk [vmem:[%s4 + $0x40] sm:$0xff] %vm983, %v947
  %993 = vst.msk [vmem:[%s4 + $0x48] sm:$0xff] %vm983, %v952
  %994 = vst.msk [vmem:[%s4 + $0x50] sm:$0xff] %vm983, %v957
  %995 = vst.msk [vmem:[%s4 + $0x58] sm:$0xff] %vm983, %v962
  %996 = vst.msk [vmem:[%s4 + $0x60] sm:$0xff] %vm983, %v967
  %997 = vst.msk [vmem:[%s4 + $0x68] sm:$0xff] %vm983, %v972
  %998 = vst.msk [vmem:[%s4 + $0x70] sm:$0xff] %vm983, %v977
  %999 = vst.msk [vmem:[%s4 + $0x78] sm:$0xff] %vm983, %v982
  %v1000 = vmul.f32 %v712, %v712
  %v1001 = vmul.f32 %v714, %v714
  %v1002 = vmul.f32 %v825, %v825
  %v1003 = vmul.f32 %v827, %v827
  %v1004 = vmul.f32 %v716, %v716
  %v1005 = vmul.f32 %v718, %v718
  %v1006 = vmul.f32 %v829, %v829
  %v1007 = vmul.f32 %v831, %v831
  %v1008 = vmul.f32 %v722, %v722
  %v1009 = vmul.f32 %v724, %v724
  %v1010 = vmul.f32 %v835, %v835
  %v1011 = vmul.f32 %v837, %v837
  %v1012 = vmul.f32 %v726, %v726
  %v1013 = vmul.f32 %v728, %v728
  %v1014 = vmul.f32 %v839, %v839
  %v1015 = vmul.f32 %v841, %v841
  %v1016 = vmul.f32 %v732, %v732
  %v1017 = vmul.f32 %v734, %v734
  %v1018 = vmul.f32 %v845, %v845
  %v1019 = vmul.f32 %v847, %v847
  %v1020 = vmul.f32 %v736, %v736
  %v1021 = vmul.f32 %v738, %v738
  %v1022 = vmul.f32 %v849, %v849
  %v1023 = vmul.f32 %v851, %v851
  %v1024 = vmul.f32 %v742, %v742
  %v1025 = vmul.f32 %v744, %v744
  %v1026 = vmul.f32 %v855, %v855
  %v1027 = vmul.f32 %v857, %v857
  %v1028 = vmul.f32 %v746, %v746
  %v1029 = vmul.f32 %v748, %v748
  %v1030 = vmul.f32 %v859, %v859
  %v1031 = vmul.f32 %v861, %v861
  %v1032 = vmul.f32 %v752, %v752
  %v1033 = vmul.f32 %v754, %v754
  %v1034 = vmul.f32 %v865, %v865
  %v1035 = vmul.f32 %v867, %v867
  %v1036 = vmul.f32 %v756, %v756
  %v1037 = vmul.f32 %v758, %v758
  %v1038 = vmul.f32 %v869, %v869
  %v1039 = vmul.f32 %v871, %v871
  %v1040 = vmul.f32 %v762, %v762
  %v1041 = vmul.f32 %v764, %v764
  %v1042 = vmul.f32 %v875, %v875
  %v1043 = vmul.f32 %v877, %v877
  %v1044 = vmul.f32 %v766, %v766
  %v1045 = vmul.f32 %v768, %v768
  %v1046 = vmul.f32 %v879, %v879
  %v1047 = vmul.f32 %v881, %v881
  %v1048 = vmul.f32 %v772, %v772
  %v1049 = vmul.f32 %v774, %v774
  %v1050 = vmul.f32 %v885, %v885
  %v1051 = vmul.f32 %v887, %v887
  %v1052 = vmul.f32 %v776, %v776
  %v1053 = vmul.f32 %v778, %v778
  %v1054 = vmul.f32 %v889, %v889
  %v1055 = vmul.f32 %v891, %v891
  %v1056 = vmul.f32 %v782, %v782
  %v1057 = vmul.f32 %v784, %v784
  %v1058 = vmul.f32 %v895, %v895
  %v1059 = vmul.f32 %v897, %v897
  %v1060 = vmul.f32 %v786, %v786
  %v1061 = vmul.f32 %v788, %v788
  %v1062 = vmul.f32 %v899, %v899
  %v1063 = vmul.f32 %v901, %v901
  %v1064 = vadd.f32 %v1000, %v1001
  %v1065 = vadd.f32 %v1064, %v1002
  %v1066 = vadd.f32 %v1065, %v1003
  %1067 = vadd.xlane.f32.xlu0 %v1066
  %v1068 = vpop.xlane.xlu0 %1067
  %v1069 = vadd.f32 %v1004, %v1005
  %v1070 = vadd.f32 %v1069, %v1006
  %v1071 = vadd.f32 %v1070, %v1007
  %1072 = vadd.xlane.f32.xlu0 %v1071
  %v1073 = vpop.xlane.xlu0 %1072
  %v1074 = vadd.f32 %v1008, %v1009
  %v1075 = vadd.f32 %v1074, %v1010
  %v1076 = vadd.f32 %v1075, %v1011
  %1077 = vadd.xlane.f32.xlu0 %v1076
  %v1078 = vpop.xlane.xlu0 %1077
  %v1079 = vadd.f32 %v1012, %v1013
  %v1080 = vadd.f32 %v1079, %v1014
  %v1081 = vadd.f32 %v1080, %v1015
  %1082 = vadd.xlane.f32.xlu0 %v1081
  %v1083 = vpop.xlane.xlu0 %1082
  %v1084 = vadd.f32 %v1016, %v1017
  %v1085 = vadd.f32 %v1084, %v1018
  %v1086 = vadd.f32 %v1085, %v1019
  %1087 = vadd.xlane.f32.xlu0 %v1086
  %v1088 = vpop.xlane.xlu0 %1087
  %v1089 = vadd.f32 %v1020, %v1021
  %v1090 = vadd.f32 %v1089, %v1022
  %v1091 = vadd.f32 %v1090, %v1023
  %1092 = vadd.xlane.f32.xlu0 %v1091
  %v1093 = vpop.xlane.xlu0 %1092
  %v1094 = vadd.f32 %v1024, %v1025
  %v1095 = vadd.f32 %v1094, %v1026
  %v1096 = vadd.f32 %v1095, %v1027
  %1097 = vadd.xlane.f32.xlu0 %v1096
  %v1098 = vpop.xlane.xlu0 %1097
  %v1099 = vadd.f32 %v1028, %v1029
  %v1100 = vadd.f32 %v1099, %v1030
  %v1101 = vadd.f32 %v1100, %v1031
  %1102 = vadd.xlane.f32.xlu0 %v1101
  %v1103 = vpop.xlane.xlu0 %1102
  %v1104 = vadd.f32 %v1032, %v1033
  %v1105 = vadd.f32 %v1104, %v1034
  %v1106 = vadd.f32 %v1105, %v1035
  %1107 = vadd.xlane.f32.xlu0 %v1106
  %v1108 = vpop.xlane.xlu0 %1107
  %v1109 = vadd.f32 %v1036, %v1037
  %v1110 = vadd.f32 %v1109, %v1038
  %v1111 = vadd.f32 %v1110, %v1039
  %1112 = vadd.xlane.f32.xlu0 %v1111
  %v1113 = vpop.xlane.xlu0 %1112
  %v1114 = vadd.f32 %v1040, %v1041
  %v1115 = vadd.f32 %v1114, %v1042
  %v1116 = vadd.f32 %v1115, %v1043
  %1117 = vadd.xlane.f32.xlu0 %v1116
  %v1118 = vpop.xlane.xlu0 %1117
  %v1119 = vadd.f32 %v1044, %v1045
  %v1120 = vadd.f32 %v1119, %v1046
  %v1121 = vadd.f32 %v1120, %v1047
  %1122 = vadd.xlane.f32.xlu0 %v1121
  %v1123 = vpop.xlane.xlu0 %1122
  %v1124 = vadd.f32 %v1048, %v1049
  %v1125 = vadd.f32 %v1124, %v1050
  %v1126 = vadd.f32 %v1125, %v1051
  %1127 = vadd.xlane.f32.xlu0 %v1126
  %v1128 = vpop.xlane.xlu0 %1127
  %v1129 = vadd.f32 %v1052, %v1053
  %v1130 = vadd.f32 %v1129, %v1054
  %v1131 = vadd.f32 %v1130, %v1055
  %1132 = vadd.xlane.f32.xlu0 %v1131
  %v1133 = vpop.xlane.xlu0 %1132
  %v1134 = vadd.f32 %v1056, %v1057
  %v1135 = vadd.f32 %v1134, %v1058
  %v1136 = vadd.f32 %v1135, %v1059
  %1137 = vadd.xlane.f32.xlu0 %v1136
  %v1138 = vpop.xlane.xlu0 %1137
  %v1139 = vadd.f32 %v1060, %v1061
  %v1140 = vadd.f32 %v1139, %v1062
  %v1141 = vadd.f32 %v1140, %v1063
  %1142 = vadd.xlane.f32.xlu0 %v1141
  %v1143 = vpop.xlane.xlu0 %1142
  %1144 = vst.msk [vmem:[%s5] sm:$0xff] %vm983, %v1068
  %1145 = vst.msk [vmem:[%s5 + $0x8] sm:$0xff] %vm983, %v1073
  %1146 = vst.msk [vmem:[%s5 + $0x10] sm:$0xff] %vm983, %v1078
  %1147 = vst.msk [vmem:[%s5 + $0x18] sm:$0xff] %vm983, %v1083
  %1148 = vst.msk [vmem:[%s5 + $0x20] sm:$0xff] %vm983, %v1088
  %1149 = vst.msk [vmem:[%s5 + $0x28] sm:$0xff] %vm983, %v1093
  %1150 = vst.msk [vmem:[%s5 + $0x30] sm:$0xff] %vm983, %v1098
  %1151 = vst.msk [vmem:[%s5 + $0x38] sm:$0xff] %vm983, %v1103
  %1152 = vst.msk [vmem:[%s5 + $0x40] sm:$0xff] %vm983, %v1108
  %1153 = vst.msk [vmem:[%s5 + $0x48] sm:$0xff] %vm983, %v1113
  %1154 = vst.msk [vmem:[%s5 + $0x50] sm:$0xff] %vm983, %v1118
  %1155 = vst.msk [vmem:[%s5 + $0x58] sm:$0xff] %vm983, %v1123
  %1156 = vst.msk [vmem:[%s5 + $0x60] sm:$0xff] %vm983, %v1128
  %1157 = vst.msk [vmem:[%s5 + $0x68] sm:$0xff] %vm983, %v1133
  %1158 = vst.msk [vmem:[%s5 + $0x70] sm:$0xff] %vm983, %v1138
  %1159 = vst.msk [vmem:[%s5 + $0x78] sm:$0xff] %vm983, %v1143
  // Predicated region
  $region18: #{tpu_custom_call.1} parent=0 // pred_check
    _
  $region19: #{tpu_custom_call.1} parent=0 // pred_check_branch
    %1161 = sbr.rel (0) target = $region21
  $region20: #{tpu_custom_call.1} parent=0 // pred_region
    _
  $region21: #{tpu_custom_call.1} parent=0 // pred_fallthru
    _
  // Predicated region
  $region22: #{tpu_custom_call.1} parent=0 // pred_check
    _
  $region23: #{tpu_custom_call.1} parent=0 // pred_check_branch
    %1163 = sbr.rel (0) target = $region25
  $region24: #{tpu_custom_call.1} parent=0 // pred_region
    _
  $region25: #{tpu_custom_call.1} parent=0 // pred_fallthru
    _
  // Predicated region
  $region26: #{tpu_custom_call.1} parent=0 // pred_check
    _
  $region27: #{tpu_custom_call.1} parent=0 // pred_check_branch
    %1165 = sbr.rel (0) target = $region29
  $region28: #{tpu_custom_call.1} parent=0 // pred_region
    _
  $region29: #{tpu_custom_call.1} parent=0 // pred_fallthru
    _
  // Predicated region
  $region30: #{tpu_custom_call.1} parent=0 // pred_check
    _
  $region31: #{tpu_custom_call.1} parent=0 // pred_check_branch
    %1167 = sbr.rel (0) target = $region33
  $region32: #{tpu_custom_call.1} parent=0 // pred_region
    _
  $region33: #{tpu_custom_call.1} parent=0 // pred_fallthru
    _

</llo_original>
